<compile_context>
chip_gen: v5e
topology: v5e:2x2
jax: 0.10.0
libtpu: 0.0.40
codegen_flags: <defaults>
</compile_context>

<pallas_src>
import jax
import jax.numpy as jnp
from jax.experimental import pallas as pl
from jax.experimental.pallas import tpu as pltpu

LANE = 128        # last block dim: always a full 128-lane vector
ROW_TILE = 1024   # sublane rows per grid step (512 KiB/block in f32)


def _exponential_kernel(params_ref, r_ref, o_ref):
    """o = A * exp(-a * r) + B / r on one lane-dense (TR, 128) tile."""
    A = params_ref[0]
    a = params_ref[1]
    B = params_ref[2]
    # params_ref[3] is `b`: declared by the PyTorch module but unused in forward.
    r = r_ref[...]
    o_ref[...] = A * jnp.exp(-a * r) + B * pl.reciprocal(r)


def exponential_forward(r, params, *, row_tile=ROW_TILE):
    """Apply Exponential.forward elementwise to `r`.

    r:       any-shape float array (distances).
    params:  (4,) float32 array = [A, a, B, b] (b unused in forward).
    Returns an array with the same shape/dtype as `r`.
    """
    orig_shape = r.shape
    orig_dtype = r.dtype

    flat = jnp.ravel(r).astype(jnp.float32)
    n = flat.shape[0]

    # Lay the data out lane-dense: (rows, 128), rows padded to a multiple of
    # the row tile (itself a multiple of 8 to satisfy the (8, 128) constraint).
    rows = pl.cdiv(n, LANE)
    if rows <= row_tile:
        tr = max(8, ((rows + 7) // 8) * 8)
        rows_pad = tr
    else:
        tr = row_tile
        rows_pad = ((rows + tr - 1) // tr) * tr

    pad = rows_pad * LANE - n
    if pad:
        # Pad with ones so the padded lanes stay finite (they are sliced off).
        flat = jnp.concatenate([flat, jnp.ones((pad,), jnp.float32)])
    r2d = flat.reshape(rows_pad, LANE)

    grid_spec = pltpu.PrefetchScalarGridSpec(
        num_scalar_prefetch=0,
        grid=(rows_pad // tr,),
        in_specs=(
            # Scalar parameters: whole (4,) vector resident in SMEM.
            pl.BlockSpec(memory_space=pltpu.MemorySpace.SMEM),
            # r tile: TR rows x 128 lanes, auto double-buffered.
            pl.BlockSpec((tr, LANE), lambda i: (i, 0)),
        ),
        out_specs=pl.BlockSpec((tr, LANE), lambda i: (i, 0)),
    )

    out2d = pl.pallas_call(
        _exponential_kernel,
        out_shape=jax.ShapeDtypeStruct((rows_pad, LANE), jnp.float32),
        grid_spec=grid_spec,
        compiler_params=pltpu.CompilerParams(
            dimension_semantics=("parallel",)),   # shards row tiles on v7x's 2 TCs
    )(params.astype(jnp.float32), r2d)

    return out2d.reshape(-1)[:n].reshape(orig_shape).astype(orig_dtype)


def init_params():
    # Matches Exponential.__init__: A=150, a=0.1, B=150, b=0.1.
    return jnp.array([150.0, 0.1, 150.0, 0.1], jnp.float32)


def _reference(r, params):
    A, a, B, _b = params
    return A * jnp.exp(-1.0 * a * r) + B * (1.0 / r)


if __name__ == "__main__":
    key = jax.random.PRNGKey(0)
    k1, k2 = jax.random.split(key)

    params = init_params()

    # Small shapes consistent with the module: pairwise distances for a batch
    # of molecules, r[batch=2, atoms=8, atoms=8], strictly positive.
    r = jax.random.uniform(k1, (2, 8, 8), jnp.float32, minval=0.5, maxval=5.0)
    out = exponential_forward(r, params)
    jax.block_until_ready(out)

    ref = _reference(r, params)
    assert out.shape == r.shape
    assert jnp.allclose(out, ref, rtol=1e-4, atol=1e-4)

    # Second check: force the multi-tile + padding path (several grid steps)
    # using a small row tile, to exercise the pipelined/parallel layout.
    r2 = jax.random.uniform(k2, (2, 48, 48), jnp.float32, minval=0.5, maxval=5.0)
    out2 = exponential_forward(r2, params, row_tile=16)
    jax.block_until_ready(out2)
    assert jnp.allclose(out2, _reference(r2, params), rtol=1e-4, atol=1e-4)

    print("KERNEL_OK")
</pallas_src>

<mosaic_0001>
module attributes {stable_mosaic.version = 11 : i64} {
  func.func @_exponential_kernel(%arg0: i32, %arg1: memref<4xf32, #tpu.memory_space<smem>>, %arg2: memref<8x128xf32, #tpu.memory_space<vmem>>, %arg3: memref<8x128xf32, #tpu.memory_space<vmem>>) attributes {dimension_semantics = [#tpu.dimension_semantics<parallel>], iteration_bounds = array<i64: 1>, scalar_prefetch = 0 : i64, scratch_operands = 0 : i64, tpu.core_type = #tpu.core_type<tc>, window_params = [{transform_indices = @transform_0, window_bounds = array<i64: 4>}, {transform_indices = @transform_1, window_bounds = array<i64: 8, 128>}, {transform_indices = @transform_2, window_bounds = array<i64: 8, 128>}]} {
    %c0 = arith.constant 0 : index
    %0 = memref.load %arg1[%c0] : memref<4xf32, #tpu.memory_space<smem>>
    %c1 = arith.constant 1 : index
    %1 = memref.load %arg1[%c1] : memref<4xf32, #tpu.memory_space<smem>>
    %c2 = arith.constant 2 : index
    %2 = memref.load %arg1[%c2] : memref<4xf32, #tpu.memory_space<smem>>
    %c0_0 = arith.constant 0 : index
    %c0_1 = arith.constant 0 : index
    %3 = vector.load %arg2[%c0_0, %c0_1] : memref<8x128xf32, #tpu.memory_space<vmem>>, vector<8x128xf32>
    %cst = arith.constant 0.000000e+00 : f32
    %4 = arith.subf %cst, %1 : f32
    %5 = vector.broadcast %4 : f32 to vector<8x128xf32>
    %6 = arith.mulf %5, %3 : vector<8x128xf32>
    %7 = math.exp %6 : vector<8x128xf32>
    %8 = vector.broadcast %0 : f32 to vector<8x128xf32>
    %9 = arith.mulf %8, %7 : vector<8x128xf32>
    %10 = tpu.reciprocal %3 : vector<8x128xf32> -> vector<8x128xf32>
    %11 = vector.broadcast %2 : f32 to vector<8x128xf32>
    %12 = arith.mulf %11, %10 : vector<8x128xf32>
    %13 = arith.addf %9, %12 : vector<8x128xf32>
    %c0_2 = arith.constant 0 : index
    %c0_3 = arith.constant 0 : index
    %14 = vector.load %arg3[%c0_2, %c0_3] : memref<8x128xf32, #tpu.memory_space<vmem>>, vector<8x128xf32>
    tpu.vector_store %arg3[%c0_2, %c0_3], %13 {strides = array<i32>} : memref<8x128xf32, #tpu.memory_space<vmem>>, vector<8x128xf32>,
    return
  }
  func.func @transform_0(%arg0: i32) -> i32 {
    %c0_i32 = arith.constant 0 : i32
    %c0_i32_0 = arith.constant 0 : i32
    return %c0_i32 : i32
  }
  func.func @transform_1(%arg0: i32) -> (i32, i32) {
    %c0_i32 = arith.constant 0 : i32
    %c0_i32_0 = arith.constant 0 : i32
    return %arg0, %c0_i32 : i32, i32
  }
  func.func @transform_2(%arg0: i32) -> (i32, i32) {
    %c0_i32 = arith.constant 0 : i32
    %c0_i32_0 = arith.constant 0 : i32
    return %arg0, %c0_i32 : i32, i32
  }
}

</mosaic_0001>

<llo_original>
// kernel: tpu_custom_call.1
$region0: #{tpu_custom_call.1}
  #allocation0 [shape = 'u32[]', space=smem, size = 0x4, offset = 0x4, fixed_abs, tag = 'smem constant byte address 0x4 - core index']
  #allocation1 [shape = 'u32[72,128]{1,0:T(1,128)}', space=vmem, size = 0x9000, scoped, tag = 'internal scratch']
  %s0 = inlined_call_operand.hbm [shape: f32[4], index: 0, kind: input, shape index: {}]
  %s1 = inlined_call_operand.hbm [shape: f32[8,128], index: 1, kind: input, shape index: {}]
  %s2 = inlined_call_operand.hbm [shape: f32[8,128], index: 2, kind: output, shape index: {}]
  %s3 = sld [smem:[#allocation0]]
  $region26: #{tpu_custom_call.1} parent=0
    _
  %s5 = ssub.s32 1, %s3
  %s6 = scalar_select 0, %s5, %s3
  $region1: #{tpu_custom_call.1} parent=0
    #allocation2 [shape = 'u8[512]{0}', space=smem, size = 0x200, scoped, tag = 'input window, operand 0, single buffered']
    #allocation3 [shape = 's32[1]{0}', space=sflag, size = 0x4, scoped, tag = 'scoped memory for tpu_custom_call.1']
    #allocation4 [shape = 's32[1]{0}', space=sflag, size = 0x4, scoped, tag = 'scoped memory for tpu_custom_call.1']
    #allocation5 [shape = 's32[1]{0}', space=sflag, size = 0x4, scoped, tag = 'scoped memory for tpu_custom_call.1']
    #allocation6 [shape = 'u8[4096]{0}', space=vmem, size = 0x1000, scoped, tag = 'input window, operand 1, single buffered']
    #allocation7 [shape = 'u8[4096]{0}', space=vmem, size = 0x1000, scoped, tag = 'output window, operand 0, single buffered']
    %7 = vsyncpa [#allocation5], 0
    %8 = vsyncpa [#allocation3], 0
    %9 = vsyncpa [#allocation4], 0
    // Predicated region
    $region2: #{tpu_custom_call.1} parent=1 // pred_check
      _
    $region3: #{tpu_custom_call.1} parent=1 // pred_check_branch
      %11 = sbr.rel (0) target = $region5
    $region4: #{tpu_custom_call.1} parent=1 // pred_region
      %13 = vsyncadd [#allocation5], 0
      %s15 = sshll.u32 %s0, 4
      %s16 = int_to_ptr.hbm [resolvable:$true] %s15
      %18 = dma.hbm_to_smem %s16, 16, [#allocation2], [#allocation5]
    $region5: #{tpu_custom_call.1} parent=1 // pred_fallthru
      _
    // Predicated region
    $region6: #{tpu_custom_call.1} parent=1 // pred_check
      _
    $region7: #{tpu_custom_call.1} parent=1 // pred_check_branch
      %20 = sbr.rel (0) target = $region9
    $region8: #{tpu_custom_call.1} parent=1 // pred_region
      %22 = vsyncadd [#allocation3], 0
      %s24 = sshll.u32 %s1, 4
      %s25 = int_to_ptr.hbm [resolvable:$true] %s24
      %s26 = sshll.u32 [#allocation6], 4
      %s27 = int_to_ptr.vmem [resolvable:$true] %s26
      %29 = dma.hbm_to_vmem [thread:$0]  %s25, 128, %s27, [#allocation3]
    $region9: #{tpu_custom_call.1} parent=1 // pred_fallthru
      _
    // Predicated region
    $region10: #{tpu_custom_call.1} parent=1 // pred_check
      _
    $region11: #{tpu_custom_call.1} parent=1 // pred_check_branch
      %31 = sbr.rel (0) target = $region13
    $region12: #{tpu_custom_call.1} parent=1 // pred_region
      %33 = dma.done [#allocation5], 16
    $region13: #{tpu_custom_call.1} parent=1 // pred_fallthru
      _
    // Predicated region
    $region14: #{tpu_custom_call.1} parent=1 // pred_check
      _
    $region15: #{tpu_custom_call.1} parent=1 // pred_check_branch
      %35 = sbr.rel (0) target = $region17
    $region16: #{tpu_custom_call.1} parent=1 // pred_region
      %37 = dma.done [#allocation3], 128
    $region17: #{tpu_custom_call.1} parent=1 // pred_fallthru
      _
    %38 = sfence
    %s39 = sld [smem:[#allocation2]]
    %s40 = sld [smem:[#allocation2 + $0x1]]
    %s41 = sld [smem:[#allocation2 + $0x2]]
    %v42 = vld [vmem:[#allocation6] sm:$0xff]
    %s43 = ssub.f32 0.0, %s40
    %v44 = vstv %s43
    %v45 = vmul.f32 %v44, %v42
    %v46 = vmul.f32 %v45, 1.442695
    %v47 = vpow.pop %v46
    %v48 = vstv %s39
    %v49 = vmul.f32 %v48, %v47
    %v50 = vrcp.pop %v42
    %v51 = vmul.f32 %v42, %v50
    %v52 = vsub.f32 1.0, %v51
    %v53 = vmul.f32 %v50, %v52
    %v54 = vadd.f32 %v50, %v53
    %vm55 = vweird.f32 %v42
    %vm56 = vweird.f32 %v50
    %vm57 = vmor %vm55, %vm56
    %v58 = vsel %vm57, %v50, %v54
    %v59 = vand.u32 2147483647, %v42
    %vm60 = vcmp.eq.f32.partialorder %v59, 8.507059e+37
    %v61 = vand.u32 %v42, 2147483648
    %v62 = vor.u32 1.1754944e-38, %v61
    %v63 = vsel %vm60, %v62, %v58
    %v64 = vstv %s41
    %v65 = vmul.f32 %v64, %v63
    %v66 = vadd.f32 %v49, %v65
    %67 = vst [vmem:[#allocation7] sm:$0xff] %v66
    // Predicated region
    $region18: #{tpu_custom_call.1} parent=1 // pred_check
      _
    $region19: #{tpu_custom_call.1} parent=1 // pred_check_branch
      %69 = sbr.rel (0) target = $region21
    $region20: #{tpu_custom_call.1} parent=1 // pred_region
      %71 = vsyncadd [#allocation4], 0
      %s73 = sshll.u32 [#allocation7], 4
      %s74 = int_to_ptr.vmem [resolvable:$true] %s73
      %s75 = sshll.u32 %s2, 4
      %s76 = int_to_ptr.hbm [resolvable:$true] %s75
      %78 = dma.vmem_to_hbm [thread:$0]  %s74, 128, %s76, [#allocation4]
    $region21: #{tpu_custom_call.1} parent=1 // pred_fallthru
      _
    // Predicated region
    $region22: #{tpu_custom_call.1} parent=1 // pred_check
      _
    $region23: #{tpu_custom_call.1} parent=1 // pred_check_branch
      %80 = sbr.rel (0) target = $region25
    $region24: #{tpu_custom_call.1} parent=1 // pred_region
      %82 = dma.done [#allocation4], 128
    $region25: #{tpu_custom_call.1} parent=1 // pred_fallthru
      _
    %83 = vsyncpa [#allocation3], 1
    %84 = vsyncpa [#allocation4], 1
    %85 = vsyncpa [#allocation5], 1

</llo_original>
